<compile_context>
chip_gen: v6e
topology: v6e:2x2x1
jax: 0.10.0
libtpu: 0.0.40
codegen_flags: <defaults>
</compile_context>

<pallas_src>
import functools

import jax
import jax.numpy as jnp
from jax.experimental import pallas as pl
from jax.experimental.pallas import tpu as pltpu


def _gnn_pool_kernel(adj_ref, feat_ref, w_ref, b_ref, out_ref, x_acc, w_acc, *, inv_n):
    i = pl.program_id(0)   # dst (row) tile of adj
    k = pl.program_id(1)   # src (col) tile of adj == row tile of feat

    @pl.when(jnp.logical_and(i == 0, k == 0))
    def _init():
        x_acc[...] = jnp.zeros_like(x_acc)
        w_acc[...] = jnp.zeros_like(w_acc)

    a = adj_ref[...]                                   # (TN, TK) f32 adjacency tile
    s = jnp.sum(a, axis=0, keepdims=True)              # (1, TK): colsum over dst (XLU)
    # Accumulate pooled feature contraction and total edge weight (for the bias term).
    x_acc[...] += jnp.dot(s, feat_ref[...], preferred_element_type=jnp.float32)
    w_acc[...] += jnp.sum(s, axis=-1, keepdims=True)   # (1, 1)

    is_last = jnp.logical_and(i == pl.num_programs(0) - 1,
                              k == pl.num_programs(1) - 1)

    @pl.when(is_last)
    def _finalize():
        pooled = (jnp.dot(x_acc[...], w_ref[...], preferred_element_type=jnp.float32)
                  + w_acc[...] * b_ref[...]) * inv_n
        out_ref[...] = pooled.astype(out_ref.dtype)


def _pick_tile(dim, preferred=128):
    # Lane/sublane-aligned tile if the axis divides evenly, else fall back to the
    # full axis (block == full dim satisfies the (8, 128) rule).
    return preferred if dim % preferred == 0 else dim


def gnn_forward(adj, feat, weight_t, bias, *, tile_n=None, tile_k=None):
    """adj: [N, N] f32 (A[dst, src]), feat: [N, F_in], weight_t: [F_in, F_out], bias: [1, F_out]."""
    n, f_in = feat.shape
    assert adj.shape == (n, n)
    f_out = weight_t.shape[1]

    tn = tile_n or _pick_tile(n)
    tk = tile_k or _pick_tile(n)
    grid = (n // tn, n // tk)

    kernel = functools.partial(_gnn_pool_kernel, inv_n=1.0 / n)

    return pl.pallas_call(
        kernel,
        out_shape=jax.ShapeDtypeStruct((1, f_out), jnp.float32),
        grid=grid,
        in_specs=[
            pl.BlockSpec((tn, tk), lambda i, k: (i, k)),        # adjacency tile (dst, src)
            pl.BlockSpec((tk, f_in), lambda i, k: (k, 0)),      # feat rows for this src tile
            pl.BlockSpec((f_in, f_out), lambda i, k: (0, 0)),   # W (stays resident)
            pl.BlockSpec((1, f_out), lambda i, k: (0, 0)),      # bias (stays resident)
        ],
        out_specs=pl.BlockSpec((1, f_out), lambda i, k: (0, 0)),
        scratch_shapes=[
            pltpu.VMEM((1, f_in), jnp.float32),   # x_acc = colsum(adj) @ feat
            pltpu.VMEM((1, 1), jnp.float32),      # w_acc = total edge weight (scales bias)
        ],
        # Both grid axes feed the same accumulator / output block -> "arbitrary".
        compiler_params=pltpu.CompilerParams(
            dimension_semantics=("arbitrary", "arbitrary")),
    )(adj, feat, weight_t, bias)


def build_adjacency(num_nodes, src, dst, eweight=None):
    """Dense adjacency A[dst, src] = eweight (or 1.0). Glue in plain JAX."""
    vals = jnp.ones((src.shape[0],), jnp.float32) if eweight is None else eweight
    adj = jnp.zeros((num_nodes, num_nodes), jnp.float32)
    return adj.at[dst, src].add(vals)


def reference(adj, feat, weight_t, bias):
    h = feat @ weight_t + bias
    agg = adj @ h
    return jnp.mean(agg, axis=0, keepdims=True)


if __name__ == "__main__":
    key = jax.random.PRNGKey(0)
    k_feat, k_w, k_b, k_src, k_dst, k_ew = jax.random.split(key, 6)

    # Lane-aligned small sizes: N nodes, F_in -> F_out linear, ~4 edges/node + self loops.
    N, F_IN, F_OUT = 256, 128, 128
    NE = 4 * N
    src = jnp.concatenate([jax.random.randint(k_src, (NE,), 0, N), jnp.arange(N)])
    dst = jnp.concatenate([jax.random.randint(k_dst, (NE,), 0, N), jnp.arange(N)])

    feat = jax.random.normal(k_feat, (N, F_IN), jnp.float32)
    # nn.Linear(in_feats, out_feats): weight [F_OUT, F_IN], stored transposed here.
    weight = jax.random.normal(k_w, (F_OUT, F_IN), jnp.float32) * (1.0 / jnp.sqrt(F_IN))
    weight_t = jnp.asarray(weight.T)
    bias = jax.random.normal(k_b, (1, F_OUT), jnp.float32) * 0.01

    # Case 1: eweight is None -> copy_u / sum
    adj = build_adjacency(N, src, dst, eweight=None)
    out = gnn_forward(adj, feat, weight_t, bias)
    jax.block_until_ready(out)
    ref = reference(adj, feat, weight_t, bias)
    assert jnp.allclose(out, ref, atol=1e-2, rtol=1e-2), "mismatch (unweighted)"

    # Case 2: with edge weights -> u_mul_e / sum (folded into weighted adjacency)
    eweight = jax.random.uniform(k_ew, (src.shape[0],), jnp.float32)
    adj_w = build_adjacency(N, src, dst, eweight=eweight)
    out_w = gnn_forward(adj_w, feat, weight_t, bias)
    jax.block_until_ready(out_w)
    ref_w = reference(adj_w, feat, weight_t, bias)
    assert jnp.allclose(out_w, ref_w, atol=1e-2, rtol=1e-2), "mismatch (weighted)"

    print("KERNEL_OK")
</pallas_src>

<mosaic_0001>
module attributes {stable_mosaic.version = 11 : i64} {
  func.func @_gnn_pool_kernel(%arg0: i32, %arg1: i32, %arg2: memref<128x128xf32, #tpu.memory_space<vmem>>, %arg3: memref<128x128xf32, #tpu.memory_space<vmem>>, %arg4: memref<128x128xf32, #tpu.memory_space<vmem>>, %arg5: memref<1x128xf32, #tpu.memory_space<vmem>>, %arg6: memref<1x128xf32, #tpu.memory_space<vmem>>, %arg7: memref<1x128xf32, #tpu.memory_space<vmem>>, %arg8: memref<1x1xf32, #tpu.memory_space<vmem>>) attributes {dimension_semantics = [#tpu.dimension_semantics<arbitrary>, #tpu.dimension_semantics<arbitrary>], iteration_bounds = array<i64: 2, 2>, scalar_prefetch = 0 : i64, scratch_operands = 2 : i64, tpu.core_type = #tpu.core_type<tc>, window_params = [{transform_indices = @transform_0, window_bounds = array<i64: 128, 128>}, {transform_indices = @transform_1, window_bounds = array<i64: 128, 128>}, {pipeline_mode = #tpu.pipeline_mode<synchronous>, transform_indices = @transform_2, window_bounds = array<i64: 128, 128>}, {pipeline_mode = #tpu.pipeline_mode<synchronous>, transform_indices = @transform_3, window_bounds = array<i64: 1, 128>}, {pipeline_mode = #tpu.pipeline_mode<synchronous>, transform_indices = @transform_4, window_bounds = array<i64: 1, 128>}]} {
    %c0_i32 = arith.constant 0 : i32
    %0 = arith.cmpi eq, %arg0, %c0_i32 : i32
    %c0_i32_0 = arith.constant 0 : i32
    %1 = arith.cmpi eq, %arg1, %c0_i32_0 : i32
    %2 = arith.andi %0, %1 : i1
    %3 = arith.extui %2 : i1 to i32
    %c0_i32_1 = arith.constant 0 : i32
    %4 = arith.cmpi ne, %3, %c0_i32_1 : i32
    scf.if %4 {
      %cst_17 = arith.constant 0.000000e+00 : f32
      %23 = vector.broadcast %cst_17 : f32 to vector<1x128xf32>
      %c0_18 = arith.constant 0 : index
      %c0_19 = arith.constant 0 : index
      %24 = vector.load %arg7[%c0_18, %c0_19] : memref<1x128xf32, #tpu.memory_space<vmem>>, vector<1x128xf32>
      tpu.vector_store %arg7[%c0_18, %c0_19], %23 {strides = array<i32>} : memref<1x128xf32, #tpu.memory_space<vmem>>, vector<1x128xf32>,
      %cst_20 = arith.constant 0.000000e+00 : f32
      %25 = vector.broadcast %cst_20 : f32 to vector<1x1xf32>
      %c0_21 = arith.constant 0 : index
      %c0_22 = arith.constant 0 : index
      %26 = vector.load %arg8[%c0_21, %c0_22] : memref<1x1xf32, #tpu.memory_space<vmem>>, vector<1x1xf32>
      tpu.vector_store %arg8[%c0_21, %c0_22], %25 {strides = array<i32>} : memref<1x1xf32, #tpu.memory_space<vmem>>, vector<1x1xf32>,
    } else {
    }
    %c0 = arith.constant 0 : index
    %c0_2 = arith.constant 0 : index
    %5 = vector.load %arg2[%c0, %c0_2] : memref<128x128xf32, #tpu.memory_space<vmem>>, vector<128x128xf32>
    %cst = arith.constant dense<0.000000e+00> : vector<128xf32>
    %6 = vector.multi_reduction <add>, %5, %cst [0] : vector<128x128xf32> to vector<128xf32>
    %7 = vector.shape_cast %6 : vector<128xf32> to vector<1x128xf32>
    %c0_3 = arith.constant 0 : index
    %c0_4 = arith.constant 0 : index
    %8 = vector.load %arg7[%c0_3, %c0_4] : memref<1x128xf32, #tpu.memory_space<vmem>>, vector<1x128xf32>
    %c0_5 = arith.constant 0 : index
    %c0_6 = arith.constant 0 : index
    %9 = vector.load %arg3[%c0_5, %c0_6] : memref<128x128xf32, #tpu.memory_space<vmem>>, vector<128x128xf32>
    %cst_7 = arith.constant dense<0.000000e+00> : vector<1x128xf32>
    %10 = tpu.matmul %7, %9, %cst_7 {dimension_numbers = #tpu.dot_dimension_numbers<[1], [0], [0], [1], [0, 0, 1, 1], [], []>} : vector<1x128xf32>, vector<128x128xf32>, vector<1x128xf32> -> vector<1x128xf32>
    %11 = arith.addf %8, %10 : vector<1x128xf32>
    %c0_8 = arith.constant 0 : index
    %c0_9 = arith.constant 0 : index
    %12 = vector.load %arg7[%c0_8, %c0_9] : memref<1x128xf32, #tpu.memory_space<vmem>>, vector<1x128xf32>
    tpu.vector_store %arg7[%c0_8, %c0_9], %11 {strides = array<i32>} : memref<1x128xf32, #tpu.memory_space<vmem>>, vector<1x128xf32>,
    %c0_10 = arith.constant 0 : index
    %c0_11 = arith.constant 0 : index
    %13 = vector.load %arg8[%c0_10, %c0_11] : memref<1x1xf32, #tpu.memory_space<vmem>>, vector<1x1xf32>
    %cst_12 = arith.constant dense<0.000000e+00> : vector<1xf32>
    %14 = vector.multi_reduction <add>, %7, %cst_12 [1] : vector<1x128xf32> to vector<1xf32>
    %15 = vector.shape_cast %14 : vector<1xf32> to vector<1x1xf32>
    %16 = arith.addf %13, %15 : vector<1x1xf32>
    %c0_13 = arith.constant 0 : index
    %c0_14 = arith.constant 0 : index
    %17 = vector.load %arg8[%c0_13, %c0_14] : memref<1x1xf32, #tpu.memory_space<vmem>>, vector<1x1xf32>
    tpu.vector_store %arg8[%c0_13, %c0_14], %16 {strides = array<i32>} : memref<1x1xf32, #tpu.memory_space<vmem>>, vector<1x1xf32>,
    %c1_i32 = arith.constant 1 : i32
    %18 = arith.cmpi eq, %arg0, %c1_i32 : i32
    %c1_i32_15 = arith.constant 1 : i32
    %19 = arith.cmpi eq, %arg1, %c1_i32_15 : i32
    %20 = arith.andi %18, %19 : i1
    %21 = arith.extui %20 : i1 to i32
    %c0_i32_16 = arith.constant 0 : i32
    %22 = arith.cmpi ne, %21, %c0_i32_16 : i32
    scf.if %22 {
      %c0_17 = arith.constant 0 : index
      %c0_18 = arith.constant 0 : index
      %23 = vector.load %arg7[%c0_17, %c0_18] : memref<1x128xf32, #tpu.memory_space<vmem>>, vector<1x128xf32>
      %c0_19 = arith.constant 0 : index
      %c0_20 = arith.constant 0 : index
      %24 = vector.load %arg4[%c0_19, %c0_20] : memref<128x128xf32, #tpu.memory_space<vmem>>, vector<128x128xf32>
      %cst_21 = arith.constant dense<0.000000e+00> : vector<1x128xf32>
      %25 = tpu.matmul %23, %24, %cst_21 {dimension_numbers = #tpu.dot_dimension_numbers<[1], [0], [0], [1], [0, 0, 1, 1], [], []>} : vector<1x128xf32>, vector<128x128xf32>, vector<1x128xf32> -> vector<1x128xf32>
      %c0_22 = arith.constant 0 : index
      %c0_23 = arith.constant 0 : index
      %26 = vector.load %arg8[%c0_22, %c0_23] : memref<1x1xf32, #tpu.memory_space<vmem>>, vector<1x1xf32>
      %c0_24 = arith.constant 0 : index
      %c0_25 = arith.constant 0 : index
      %27 = vector.load %arg5[%c0_24, %c0_25] : memref<1x128xf32, #tpu.memory_space<vmem>>, vector<1x128xf32>
      %28 = vector.broadcast %26 : vector<1x1xf32> to vector<1x128xf32>
      %29 = arith.mulf %28, %27 : vector<1x128xf32>
      %30 = arith.addf %25, %29 : vector<1x128xf32>
      %cst_26 = arith.constant 3.906250e-03 : f32
      %31 = vector.broadcast %cst_26 : f32 to vector<1x128xf32>
      %32 = arith.mulf %30, %31 : vector<1x128xf32>
      %c0_27 = arith.constant 0 : index
      %c0_28 = arith.constant 0 : index
      %33 = vector.load %arg6[%c0_27, %c0_28] : memref<1x128xf32, #tpu.memory_space<vmem>>, vector<1x128xf32>
      tpu.vector_store %arg6[%c0_27, %c0_28], %32 {strides = array<i32>} : memref<1x128xf32, #tpu.memory_space<vmem>>, vector<1x128xf32>,
    } else {
    }
    return
  }
  func.func @transform_0(%arg0: i32, %arg1: i32) -> (i32, i32) {
    %c0_i32 = arith.constant 0 : i32
    return %arg0, %arg1 : i32, i32
  }
  func.func @transform_1(%arg0: i32, %arg1: i32) -> (i32, i32) {
    %c0_i32 = arith.constant 0 : i32
    %c0_i32_0 = arith.constant 0 : i32
    return %arg1, %c0_i32 : i32, i32
  }
  func.func @transform_2(%arg0: i32, %arg1: i32) -> (i32, i32) {
    %c0_i32 = arith.constant 0 : i32
    %c0_i32_0 = arith.constant 0 : i32
    %c0_i32_1 = arith.constant 0 : i32
    return %c0_i32, %c0_i32_0 : i32, i32
  }
  func.func @transform_3(%arg0: i32, %arg1: i32) -> (i32, i32) {
    %c0_i32 = arith.constant 0 : i32
    %c0_i32_0 = arith.constant 0 : i32
    %c0_i32_1 = arith.constant 0 : i32
    return %c0_i32, %c0_i32_0 : i32, i32
  }
  func.func @transform_4(%arg0: i32, %arg1: i32) -> (i32, i32) {
    %c0_i32 = arith.constant 0 : i32
    %c0_i32_0 = arith.constant 0 : i32
    %c0_i32_1 = arith.constant 0 : i32
    return %c0_i32, %c0_i32_0 : i32, i32
  }
}

</mosaic_0001>

<llo_original>
// kernel: tpu_custom_call.1
$region0: #{tpu_custom_call.1}
  #allocation0 [shape = 'u32[]', space=smem, size = 0x4, offset = 0x4, fixed_abs, tag = 'smem constant byte address 0x4 - core index']
  #allocation1 [shape = 'u32[144,128]{1,0:T(1,128)}', space=vmem, size = 0x12000, scoped, tag = 'internal scratch']
  #allocation2 [shape = 'f32[1,128]{1,0:T(1,128)}', space=vmem, size = 0x200, scoped, tag = 'scratch operand']
  #allocation3 [shape = 'f32[1,1]{1,0:T(1,128)}', space=vmem, size = 0x200, scoped, tag = 'scratch operand']
  %s0 = inlined_call_operand.hbm [shape: f32[256,256], index: 0, kind: input, shape index: {}]
  %s1 = inlined_call_operand.hbm [shape: f32[256,128], index: 1, kind: input, shape index: {}]
  %s2 = inlined_call_operand.hbm [shape: f32[128,128], index: 2, kind: input, shape index: {}]
  %s3 = inlined_call_operand.vmem [shape: f32[1,128], index: 3, kind: input, shape index: {}]
  %s4 = inlined_call_operand.hbm [shape: f32[1,128], index: 4, kind: output, shape index: {}]
  %s5 = sld [smem:[#allocation0]]
  $region69: #{tpu_custom_call.1} parent=0
    _
  %s7 = ssub.s32 1, %s5
  %s8 = scalar_select 0, %s7, %s5
  $region1: #{tpu_custom_call.1} parent=0
    #allocation4 [shape = 'u8[131072]{0}', space=vmem, size = 0x20000, scoped, tag = 'input window, operand 0']
    #allocation5 [shape = 's32[2]{0}', space=sflag, size = 0x8, scoped, tag = 'scoped memory for tpu_custom_call.1']
    #allocation6 [shape = 's32[2]{0}', space=sflag, size = 0x8, scoped, tag = 'scoped memory for tpu_custom_call.1']
    #allocation7 [shape = 'u8[131072]{0}', space=vmem, size = 0x20000, scoped, tag = 'input window, operand 1']
    #allocation8 [shape = 's32[2]{0}', space=sflag, size = 0x8, scoped, tag = 'scoped memory for tpu_custom_call.1']
    #allocation9 [shape = 'u8[65536]{0}', space=vmem, size = 0x10000, scoped, tag = 'input window, operand 2, single buffered']
    #allocation10 [shape = 'u8[512]{0}', space=vmem, size = 0x400, scoped, tag = 'output window, operand 0, single buffered']
    %9 = vsyncpa [#allocation5], 0
    %s10 = scalar_lea.sflag [#allocation5], 1
    %11 = vsyncpa %s10, 0
    %12 = vsyncpa [#allocation8], 0
    %s13 = scalar_lea.sflag [#allocation8], 1
    %14 = vsyncpa %s13, 0
    %15 = vsyncpa [#allocation6], 0
    loop: start=0, step=1, limit=6
    $region2: #{tpu_custom_call.1} parent=1 // loop_pre_header
      _
    $region3: #{tpu_custom_call.1} parent=1 // loop_header
      %s17 = sphi 0, %s21
      %p18 = scmp.ge.s32.totalorder %s17, 6
      %s24 = sphi 0, %s36
      %s25 = sphi 0, %s32
      %s26 = sphi 0, %s24
      %s27 = sphi 0, %s25
      %s28 = sphi 0, %s26
      %s29 = sphi 0, %s27
      %s41 = sphi 0, %s43
      %s44 = sphi 0, %s41
      %s45 = sphi 0, %s44
      %s61 = sphi 0, %s45
      %s67 = sphi 0, %s69
      %s70 = sphi 0, %s67
      %s71 = sphi 0, %s70
      %s87 = sphi 0, %s71
      %s91 = sphi 0, %s91
      %s93 = sphi 0, %s91
      %s94 = sphi 0, %s93
      %s108 = sphi 0, %s94
      %s112 = sphi 0, %s112
      %s114 = sphi 0, %s112
      %s115 = sphi 0, %s114
      %s129 = sphi 0, %s115
      %s133 = sphi 0, %s133
      %s135 = sphi 0, %s133
      %s136 = sphi 0, %s135
      %s150 = sphi 0, %s136
    $region4: #{tpu_custom_call.1} parent=1 // loop_header_branch
      %20 = sbr.rel (%p18) target = $region8
    $region5: #{tpu_custom_call.1} parent=1 // loop_body
      %s22 = ssub.s32 %s17, 1
      %s23 = ssub.s32 %s17, 2
      %s30 = sadd.s32 1, %s25
      %p31 = scmp.ge.s32.totalorder %s30, 2
      %s32 = scalar_select %p31, 0, %s30
      %s33 = sadd.s32 1, %s24
      %s34 = scalar_select %p31, %s33, %s24
      %p35 = scmp.ge.s32.totalorder %s34, 2
      %s36 = scalar_select %p35, 0, %s34
      %s37 = ssub.s32 %s24, %s36
      %s38 = ssub.s32 %s25, %s32
      %s39 = sor.u32 %s37, %s38
      %p40 = scmp.eq.s32.totalorder %s39, 0
      %s42 = sadd.s32 %s41, 1
      %s43 = scalar_select %p40, %s41, %s42
      %p46 = pneg %p40
      %p47 = scmp.eq.s32.totalorder %s17, 3
      %p48 = por %p46, %p47
      %p49 = scmp.ne.s32.totalorder %s41, %s44
      %p50 = scmp.eq.s32.totalorder %s17, 0
      %p51 = por %p49, %p50
      %p52 = scmp.ne.s32.totalorder %s41, %s44
      %p53 = scmp.eq.s32.totalorder %s22, 3
      %p54 = por %p52, %p53
      %p55 = scmp.ne.s32.totalorder %s44, %s45
      %p56 = scmp.eq.s32.totalorder %s22, 0
      %p57 = por %p55, %p56
      %p58 = scmp.ne.s32.totalorder %s44, %s45
      %p59 = scmp.eq.s32.totalorder %s23, 3
      %p60 = por %p58, %p59
      %p62 = scmp.ne.s32.totalorder %s45, %s61
      %p63 = scmp.eq.s32.totalorder %s23, 0
      %p64 = por %p62, %p63
      %s65 = ssub.s32 %s25, %s32
      %p66 = scmp.eq.s32.totalorder %s65, 0
      %s68 = sadd.s32 %s67, 1
      %s69 = scalar_select %p66, %s67, %s68
      %p72 = pneg %p66
      %p73 = scmp.eq.s32.totalorder %s17, 3
      %p74 = por %p72, %p73
      %p75 = scmp.ne.s32.totalorder %s67, %s70
      %p76 = scmp.eq.s32.totalorder %s17, 0
      %p77 = por %p75, %p76
      %p78 = scmp.ne.s32.totalorder %s67, %s70
      %p79 = scmp.eq.s32.totalorder %s22, 3
      %p80 = por %p78, %p79
      %p81 = scmp.ne.s32.totalorder %s70, %s71
      %p82 = scmp.eq.s32.totalorder %s22, 0
      %p83 = por %p81, %p82
      %p84 = scmp.ne.s32.totalorder %s70, %s71
      %p85 = scmp.eq.s32.totalorder %s23, 3
      %p86 = por %p84, %p85
      %p88 = scmp.ne.s32.totalorder %s71, %s87
      %p89 = scmp.eq.s32.totalorder %s23, 0
      %p90 = por %p88, %p89
      %s92 = sadd.s32 %s91, 1
      %p95 = scmp.eq.s32.totalorder %s17, 3
      %p96 = scmp.ne.s32.totalorder %s91, %s93
      %p97 = scmp.eq.s32.totalorder %s17, 0
      %p98 = por %p96, %p97
      %p99 = scmp.ne.s32.totalorder %s91, %s93
      %p100 = scmp.eq.s32.totalorder %s22, 3
      %p101 = por %p99, %p100
      %p102 = scmp.ne.s32.totalorder %s93, %s94
      %p103 = scmp.eq.s32.totalorder %s22, 0
      %p104 = por %p102, %p103
      %p105 = scmp.ne.s32.totalorder %s93, %s94
      %p106 = scmp.eq.s32.totalorder %s23, 3
      %p107 = por %p105, %p106
      %p109 = scmp.ne.s32.totalorder %s94, %s108
      %p110 = scmp.eq.s32.totalorder %s23, 0
      %p111 = por %p109, %p110
      %s113 = sadd.s32 %s112, 1
      %p116 = scmp.eq.s32.totalorder %s17, 3
      %p117 = scmp.ne.s32.totalorder %s112, %s114
      %p118 = scmp.eq.s32.totalorder %s17, 0
      %p119 = por %p117, %p118
      %p120 = scmp.ne.s32.totalorder %s112, %s114
      %p121 = scmp.eq.s32.totalorder %s22, 3
      %p122 = por %p120, %p121
      %p123 = scmp.ne.s32.totalorder %s114, %s115
      %p124 = scmp.eq.s32.totalorder %s22, 0
      %p125 = por %p123, %p124
      %p126 = scmp.ne.s32.totalorder %s114, %s115
      %p127 = scmp.eq.s32.totalorder %s23, 3
      %p128 = por %p126, %p127
      %p130 = scmp.ne.s32.totalorder %s115, %s129
      %p131 = scmp.eq.s32.totalorder %s23, 0
      %p132 = por %p130, %p131
      %s134 = sadd.s32 %s133, 1
      %p137 = scmp.eq.s32.totalorder %s17, 3
      %p138 = scmp.ne.s32.totalorder %s133, %s135
      %p139 = scmp.eq.s32.totalorder %s17, 0
      %p140 = por %p138, %p139
      %p141 = scmp.ne.s32.totalorder %s133, %s135
      %p142 = scmp.eq.s32.totalorder %s22, 3
      %p143 = por %p141, %p142
      %p144 = scmp.ne.s32.totalorder %s135, %s136
      %p145 = scmp.eq.s32.totalorder %s22, 0
      %p146 = por %p144, %p145
      %p147 = scmp.ne.s32.totalorder %s135, %s136
      %p148 = scmp.eq.s32.totalorder %s23, 3
      %p149 = por %p147, %p148
      %p151 = scmp.ne.s32.totalorder %s136, %s150
      %p152 = scmp.eq.s32.totalorder %s23, 0
      %p153 = por %p151, %p152
      %p154 = scmp.le.s32.totalorder 1, %s17
      %p155 = scmp.lt.s32.totalorder %s17, 5
      %p156 = pnand %p154, %p155
      %p157 = pneg %p156
      // Predicated region
      $region9: #{tpu_custom_call.1} parent=5 // pred_check
        _
      $region10: #{tpu_custom_call.1} parent=5 // pred_check_branch
        %159 = sbr.rel (%p156) target = $region12
      $region11: #{tpu_custom_call.1} parent=5 // pred_region
        %s160 = ssub.s32 %s17, 1
        // Predicated region
        $region13: #{tpu_custom_call.1} parent=11 // pred_check
          %p161 = pneg %p104
        $region14: #{tpu_custom_call.1} parent=11 // pred_check_branch
          %163 = sbr.rel (%p161) target = $region16
        $region15: #{tpu_custom_call.1} parent=11 // pred_region
          %s165 = ssub.s32 2048, 2048
          %166 = vsyncadd [#allocation8], %s165
          %s167 = sshll.u32 [#allocation9], 4
          %s168 = int_to_ptr.vmem [resolvable:$true] %s167
          %173 = dma.hbm_to_vmem [thread:$0]  %s2, 2048, %s168, [#allocation8], 128, 128, 8
        $region16: #{tpu_custom_call.1} parent=11 // pred_fallthru
          _
        // Predicated region
        $region17: #{tpu_custom_call.1} parent=11 // pred_check
          %p174 = pneg %p125
        $region18: #{tpu_custom_call.1} parent=11 // pred_check_branch
          %176 = sbr.rel (%p174) target = $region20
        $region19: #{tpu_custom_call.1} parent=11 // pred_region
          _
        $region20: #{tpu_custom_call.1} parent=11 // pred_fallthru
          _
      $region12: #{tpu_custom_call.1} parent=5 // pred_fallthru
        _
      %p177 = scmp.lt.s32.totalorder %s17, 4
      // Predicated region
      $region21: #{tpu_custom_call.1} parent=5 // pred_check
        %p178 = pneg %p177
      $region22: #{tpu_custom_call.1} parent=5 // pred_check_branch
        %180 = sbr.rel (%p178) target = $region24
      $region23: #{tpu_custom_call.1} parent=5 // pred_region
        // Predicated region
        $region25: #{tpu_custom_call.1} parent=23 // pred_check
          %p181 = pneg %p51
        $region26: #{tpu_custom_call.1} parent=23 // pred_check_branch
          %183 = sbr.rel (%p181) target = $region28
        $region27: #{tpu_custom_call.1} parent=23 // pred_region
          %s184 = sand.u32 %s41, 1
          %s185 = scalar_lea.sflag [#allocation5], %s184
          %s186 = sand.u32 %s41, 1
          %s187 = smul.addr %s186, 128
          %s188 = scalar_lea.vmem [#allocation4], %s187
          %s189 = smul.u32 16, %s24
          %s191 = ssub.s32 2048, 2048
          %192 = vsyncadd %s185, %s191
          %s193 = smul.addr %s189, 2
          %s194 = sadd.s32 %s25, %s193
          %s195 = smul.addr %s194, 128
          %s196 = scalar_lea.hbm %s0, %s195
          %s197 = sshll.u32 %s188, 4
          %s198 = int_to_ptr.vmem [resolvable:$true] %s197
          %203 = dma.hbm_to_vmem [thread:$0]  %s196, 2048, %s198, %s185, 256, 128, 8
        $region28: #{tpu_custom_call.1} parent=23 // pred_fallthru
          _
        // Predicated region
        $region29: #{tpu_custom_call.1} parent=23 // pred_check
          %p204 = pneg %p77
        $region30: #{tpu_custom_call.1} parent=23 // pred_check_branch
          %206 = sbr.rel (%p204) target = $region32
        $region31: #{tpu_custom_call.1} parent=23 // pred_region
          %s207 = sand.u32 %s17, 1
          %s208 = scalar_lea.sflag [#allocation8], %s207
          %s209 = sand.u32 %s67, 1
          %s210 = smul.addr %s209, 128
          %s211 = scalar_lea.vmem [#allocation7], %s210
          %s212 = smul.u32 16, %s25
          %s214 = ssub.s32 2048, 2048
          %215 = vsyncadd %s208, %s214
          %s216 = smul.addr %s212, 128
          %s217 = scalar_lea.hbm %s1, %s216
          %s218 = sshll.u32 %s211, 4
          %s219 = int_to_ptr.vmem [resolvable:$true] %s218
          %224 = dma.hbm_to_vmem [thread:$0]  %s217, 2048, %s219, %s208, 128, 128, 8
        $region32: #{tpu_custom_call.1} parent=23 // pred_fallthru
          _
      $region24: #{tpu_custom_call.1} parent=5 // pred_fallthru
        _
      %p225 = scmp.le.s32.totalorder 1, %s17
      %p226 = scmp.lt.s32.totalorder %s17, 5
      %p227 = pnand %p225, %p226
      %p228 = pneg %p227
      // Predicated region
      $region33: #{tpu_custom_call.1} parent=5 // pred_check
        _
      $region34: #{tpu_custom_call.1} parent=5 // pred_check_branch
        %230 = sbr.rel (%p227) target = $region36
      $region35: #{tpu_custom_call.1} parent=5 // pred_region
        %s231 = ssub.s32 %s17, 1
        %s232 = sand.u32 %s44, 1
        %s233 = scalar_lea.sflag [#allocation5], %s232
        %s234 = sand.u32 %s44, 1
        %s235 = smul.addr %s234, 128
        %s236 = scalar_lea.vmem [#allocation4], %s235
        // Predicated region
        $region37: #{tpu_custom_call.1} parent=35 // pred_check
          %p237 = pneg %p57
        $region38: #{tpu_custom_call.1} parent=35 // pred_check_branch
          %239 = sbr.rel (%p237) target = $region40
        $region39: #{tpu_custom_call.1} parent=35 // pred_region
          %240 = dma.done %s233, 2048
        $region40: #{tpu_custom_call.1} parent=35 // pred_fallthru
          _
        %s241 = sand.u32 %s22, 1
        %s242 = scalar_lea.sflag [#allocation8], %s241
        %s243 = sand.u32 %s70, 1
        %s244 = smul.addr %s243, 128
        %s245 = scalar_lea.vmem [#allocation7], %s244
        // Predicated region
        $region41: #{tpu_custom_call.1} parent=35 // pred_check
          %p246 = pneg %p83
        $region42: #{tpu_custom_call.1} parent=35 // pred_check_branch
          %248 = sbr.rel (%p246) target = $region44
        $region43: #{tpu_custom_call.1} parent=35 // pred_region
          %249 = dma.done %s242, 2048
        $region44: #{tpu_custom_call.1} parent=35 // pred_fallthru
          _
        // Predicated region
        $region45: #{tpu_custom_call.1} parent=35 // pred_check
          %p250 = pneg %p104
        $region46: #{tpu_custom_call.1} parent=35 // pred_check_branch
          %252 = sbr.rel (%p250) target = $region48
        $region47: #{tpu_custom_call.1} parent=35 // pred_region
          %253 = dma.done [#allocation8], 2048
        $region48: #{tpu_custom_call.1} parent=35 // pred_fallthru
          _
        %s254 = sand.u32 %s44, 1
        %s255 = scalar_lea.sflag [#allocation5], %s254
        %s256 = sand.u32 %s44, 1
        %s257 = smul.addr %s256, 128
        %s258 = scalar_lea.vmem [#allocation4], %s257
        %p259 = pneg %p57
        %p260 = pneg %p54
        %s261 = sand.u32 %s22, 1
        %s262 = scalar_lea.sflag [#allocation8], %s261
        %s263 = sand.u32 %s70, 1
        %s264 = smul.addr %s263, 128
        %s265 = scalar_lea.vmem [#allocation7], %s264
        %p266 = pneg %p83
        %p267 = pneg %p80
        %p268 = pneg %p104
        %p269 = pneg %p101
        %p270 = pneg %p125
        %p271 = pneg %p122
        %p272 = pneg %p146
        %p273 = pneg %p143
        %s274 = smul.u32 16, %s26
        %s275 = smul.u32 16, %s27
        %p276 = scmp.eq.s32.totalorder %s26, 0
        %p277 = scmp.eq.s32.totalorder %s27, 0
        %p278 = pnand %p276, %p277
        %p279 = pneg %p278
        // Predicated region
        $region49: #{tpu_custom_call.1} parent=35 // pred_check
          _
        $region50: #{tpu_custom_call.1} parent=35 // pred_check_branch
          %281 = sbr.rel (%p278) target = $region52
        $region51: #{tpu_custom_call.1} parent=35 // pred_region
          %282 = vst [vmem:[#allocation2] sm:$0x1] 0.0
          %vm283 = vcmask 0
          %284 = vst.msk [vmem:[#allocation3] sm:$0x1] %vm283, 0.0
        $region52: #{tpu_custom_call.1} parent=35 // pred_fallthru
          _
        %v285 = vld [vmem:[%s236] sm:$0xff]
        %v286 = vld [vmem:[%s236 + $0x8] sm:$0xff]
        %v287 = vld [vmem:[%s236 + $0x10] sm:$0xff]
        %v288 = vld [vmem:[%s236 + $0x18] sm:$0xff]
        %v289 = vld [vmem:[%s236 + $0x20] sm:$0xff]
        %v290 = vld [vmem:[%s236 + $0x28] sm:$0xff]
        %v291 = vld [vmem:[%s236 + $0x30] sm:$0xff]
        %v292 = vld [vmem:[%s236 + $0x38] sm:$0xff]
        %v293 = vld [vmem:[%s236 + $0x40] sm:$0xff]
        %v294 = vld [vmem:[%s236 + $0x48] sm:$0xff]
        %v295 = vld [vmem:[%s236 + $0x50] sm:$0xff]
        %v296 = vld [vmem:[%s236 + $0x58] sm:$0xff]
        %v297 = vld [vmem:[%s236 + $0x60] sm:$0xff]
        %v298 = vld [vmem:[%s236 + $0x68] sm:$0xff]
        %v299 = vld [vmem:[%s236 + $0x70] sm:$0xff]
        %v300 = vld [vmem:[%s236 + $0x78] sm:$0xff]
        %v301 = vadd.f32 %v285, %v286
        %v302 = vadd.f32 %v301, %v287
        %v303 = vadd.f32 %v302, %v288
        %v304 = vadd.f32 %v303, %v289
        %v305 = vadd.f32 %v304, %v290
        %v306 = vadd.f32 %v305, %v291
        %v307 = vadd.f32 %v306, %v292
        %v308 = vadd.f32 %v307, %v293
        %v309 = vadd.f32 %v308, %v294
        %v310 = vadd.f32 %v309, %v295
        %v311 = vadd.f32 %v310, %v296
        %v312 = vadd.f32 %v311, %v297
        %v313 = vadd.f32 %v312, %v298
        %v314 = vadd.f32 %v313, %v299
        %v315 = vadd.f32 %v314, %v300
        %v316 = vrot.slane %v315, 4
        %v317 = vadd.f32 %v315, %v316
        %v318 = vrot.slane %v317, 2
        %v319 = vadd.f32 %v317, %v318
        %v320 = vrot.slane %v319, 1
        %v321 = vadd.f32 %v319, %v320
        %v322 = vld [vmem:[#allocation2] sm:$0x1]
        %v323 = vld [vmem:[%s245] sm:$0xff]
        %v324 = vld [vmem:[%s245 + $0x8] sm:$0xff]
        %v325 = vld [vmem:[%s245 + $0x10] sm:$0xff]
        %v326 = vld [vmem:[%s245 + $0x18] sm:$0xff]
        %v327 = vld [vmem:[%s245 + $0x20] sm:$0xff]
        %v328 = vld [vmem:[%s245 + $0x28] sm:$0xff]
        %v329 = vld [vmem:[%s245 + $0x30] sm:$0xff]
        %v330 = vld [vmem:[%s245 + $0x38] sm:$0xff]
        %v331 = vld [vmem:[%s245 + $0x40] sm:$0xff]
        %v332 = vld [vmem:[%s245 + $0x48] sm:$0xff]
        %v333 = vld [vmem:[%s245 + $0x50] sm:$0xff]
        %v334 = vld [vmem:[%s245 + $0x58] sm:$0xff]
        %v335 = vld [vmem:[%s245 + $0x60] sm:$0xff]
        %v336 = vld [vmem:[%s245 + $0x68] sm:$0xff]
        %v337 = vld [vmem:[%s245 + $0x70] sm:$0xff]
        %v338 = vld [vmem:[%s245 + $0x78] sm:$0xff]
        %339 = vmatprep.subr.mxu0 0.0
        %340 = vmatpush1.msra.mxu0 %v338
        %341 = vmatprep.subr.mxu0 0.0
        %342 = vmatpush1.msra.mxu0 %v337
        %343 = vmatprep.subr.mxu0 0.0
        %344 = vmatpush1.msra.mxu0 %v336
        %345 = vmatprep.subr.mxu0 0.0
        %346 = vmatpush1.msra.mxu0 %v335
        %347 = vmatprep.subr.mxu0 0.0
        %348 = vmatpush1.msra.mxu0 %v334
        %349 = vmatprep.subr.mxu0 0.0
        %350 = vmatpush1.msra.mxu0 %v333
        %351 = vmatprep.subr.mxu0 0.0
        %352 = vmatpush1.msra.mxu0 %v332
        %353 = vmatprep.subr.mxu0 0.0
        %354 = vmatpush1.msra.mxu0 %v331
        %355 = vmatprep.subr.mxu0 0.0
        %356 = vmatpush1.msra.mxu0 %v330
        %357 = vmatprep.subr.mxu0 0.0
        %358 = vmatpush1.msra.mxu0 %v329
        %359 = vmatprep.subr.mxu0 0.0
        %360 = vmatpush1.msra.mxu0 %v328
        %361 = vmatprep.subr.mxu0 0.0
        %362 = vmatpush1.msra.mxu0 %v327
        %363 = vmatprep.subr.mxu0 0.0
        %364 = vmatpush1.msra.mxu0 %v326
        %365 = vmatprep.subr.mxu0 0.0
        %366 = vmatpush1.msra.mxu0 %v325
        %367 = vmatprep.subr.mxu0 0.0
        %368 = vmatpush1.msra.mxu0 %v324
        %369 = vmatprep.subr.mxu0 0.0
        %370 = vmatpush1.msra.mxu0 %v323
        %371 = vmatprep.subr.mxu0 0.0
        %372 = vmatpush2.msra.mxu0 0.0
        %373 = vmatprep.subr.mxu0 0.0
        %374 = vmatpush2.msra.mxu0 0.0
        %375 = vmatprep.subr.mxu0 0.0
        %376 = vmatpush2.msra.mxu0 0.0
        %377 = vmatprep.subr.mxu0 0.0
        %378 = vmatpush2.msra.mxu0 0.0
        %379 = vmatprep.subr.mxu0 0.0
        %380 = vmatpush2.msra.mxu0 0.0
        %381 = vmatprep.subr.mxu0 0.0
        %382 = vmatpush2.msra.mxu0 0.0
        %383 = vmatprep.subr.mxu0 0.0
        %384 = vmatpush2.msra.mxu0 0.0
        %385 = vmatprep.subr.mxu0 0.0
        %386 = vmatpush2.msra.mxu0 0.0
        %387 = vmatprep.subr.mxu0 0.0
        %388 = vmatpush2.msra.mxu0 0.0
        %389 = vmatprep.subr.mxu0 0.0
        %390 = vmatpush2.msra.mxu0 0.0
        %391 = vmatprep.subr.mxu0 0.0
        %392 = vmatpush2.msra.mxu0 0.0
        %393 = vmatprep.subr.mxu0 0.0
        %394 = vmatpush2.msra.mxu0 0.0
        %395 = vmatprep.subr.mxu0 0.0
        %396 = vmatpush2.msra.mxu0 0.0
        %397 = vmatprep.subr.mxu0 0.0
        %398 = vmatpush2.msra.mxu0 0.0
        %399 = vmatprep.subr.mxu0 0.0
        %400 = vmatpush2.msra.mxu0 0.0
        %401 = vmatprep.subr.mxu0 0.0
        %402 = vmatpush2.msra.mxu0 0.0
        %403 = vmatprep.mubr.f32.mxu0 0.0
        %404 = vmatmul.mubr.f32.gmra.mxu0 %v321
        %v405 = vpop.f32.mrf.mxu0
        %v406 = vadd.f32 0.0, %v405
        %v407 = vpop.f32.mrf.mxu0
        %408 = vdwg.mxu0
        %v409 = vadd.f32 %v322, %v406
        %410 = vst [vmem:[#allocation2] sm:$0x1] %v409
        %v411 = vld [vmem:[#allocation3] sm:$0x1]
        %412 = vadd.xlane.f32.xlu0 %v321
        %v413 = vpop.xlane.xlu0 %412
        %v414 = vadd.f32 %v411, %v413
        %vm415 = vcmask 0
        %416 = vst.msk [vmem:[#allocation3] sm:$0x1] %vm415, %v414
        %p417 = scmp.eq.s32.totalorder %s26, 1
        %p418 = scmp.eq.s32.totalorder %s27, 1
        %p419 = pnand %p417, %p418
        %p420 = pneg %p419
        // Predicated region
        $region53: #{tpu_custom_call.1} parent=35 // pred_check
          _
        $region54: #{tpu_custom_call.1} parent=35 // pred_check_branch
          %422 = sbr.rel (%p419) target = $region56
        $region55: #{tpu_custom_call.1} parent=35 // pred_region
          %v423 = vld [vmem:[#allocation2] sm:$0x1]
          %v424 = vld [vmem:[#allocation9] sm:$0xff]
          %v425 = vld [vmem:[#allocation9 + $0x8] sm:$0xff]
          %v426 = vld [vmem:[#allocation9 + $0x10] sm:$0xff]
          %v427 = vld [vmem:[#allocation9 + $0x18] sm:$0xff]
          %v428 = vld [vmem:[#allocation9 + $0x20] sm:$0xff]
          %v429 = vld [vmem:[#allocation9 + $0x28] sm:$0xff]
          %v430 = vld [vmem:[#allocation9 + $0x30] sm:$0xff]
          %v431 = vld [vmem:[#allocation9 + $0x38] sm:$0xff]
          %v432 = vld [vmem:[#allocation9 + $0x40] sm:$0xff]
          %v433 = vld [vmem:[#allocation9 + $0x48] sm:$0xff]
          %v434 = vld [vmem:[#allocation9 + $0x50] sm:$0xff]
          %v435 = vld [vmem:[#allocation9 + $0x58] sm:$0xff]
          %v436 = vld [vmem:[#allocation9 + $0x60] sm:$0xff]
          %v437 = vld [vmem:[#allocation9 + $0x68] sm:$0xff]
          %v438 = vld [vmem:[#allocation9 + $0x70] sm:$0xff]
          %v439 = vld [vmem:[#allocation9 + $0x78] sm:$0xff]
          %v440 = vld [vmem:[#allocation3] sm:$0x1]
          %v441 = vld [vmem:[%s3] sm:$0x1]
          %443 = vset.pattern.permute.xlu0 0
          %444 = vperm.xlu0 %443, %v440
          %v445 = vpop.permute.xlu0 %444
          %v447 = vlaneseq
          %v448 = vshrl.u32 %v447, 7
          %v449 = vsub.s32 0, %v448
          %v450 = vrot.slane %v445, %v449
          %v451 = vmul.f32 %v450, %v441
          %452 = vmatprep.subr.mxu0 0.0
          %453 = vmatpush1.msra.mxu0 %v439
          %454 = vmatprep.subr.mxu0 0.0
          %455 = vmatpush1.msra.mxu0 %v438
          %456 = vmatprep.subr.mxu0 0.0
          %457 = vmatpush1.msra.mxu0 %v437
          %458 = vmatprep.subr.mxu0 0.0
          %459 = vmatpush1.msra.mxu0 %v436
          %460 = vmatprep.subr.mxu0 0.0
          %461 = vmatpush1.msra.mxu0 %v435
          %462 = vmatprep.subr.mxu0 0.0
          %463 = vmatpush1.msra.mxu0 %v434
          %464 = vmatprep.subr.mxu0 0.0
          %465 = vmatpush1.msra.mxu0 %v433
          %466 = vmatprep.subr.mxu0 0.0
          %467 = vmatpush1.msra.mxu0 %v432
          %468 = vmatprep.subr.mxu0 0.0
          %469 = vmatpush1.msra.mxu0 %v431
          %470 = vmatprep.subr.mxu0 0.0
          %471 = vmatpush1.msra.mxu0 %v430
          %472 = vmatprep.subr.mxu0 0.0
          %473 = vmatpush1.msra.mxu0 %v429
          %474 = vmatprep.subr.mxu0 0.0
          %475 = vmatpush1.msra.mxu0 %v428
          %476 = vmatprep.subr.mxu0 0.0
          %477 = vmatpush1.msra.mxu0 %v427
          %478 = vmatprep.subr.mxu0 0.0
          %479 = vmatpush1.msra.mxu0 %v426
          %480 = vmatprep.subr.mxu0 0.0
          %481 = vmatpush1.msra.mxu0 %v425
          %482 = vmatprep.subr.mxu0 0.0
          %483 = vmatpush1.msra.mxu0 %v424
          %484 = vmatprep.subr.mxu0 0.0
          %485 = vmatpush2.msra.mxu0 0.0
          %486 = vmatprep.subr.mxu0 0.0
          %487 = vmatpush2.msra.mxu0 0.0
          %488 = vmatprep.subr.mxu0 0.0
          %489 = vmatpush2.msra.mxu0 0.0
          %490 = vmatprep.subr.mxu0 0.0
          %491 = vmatpush2.msra.mxu0 0.0
          %492 = vmatprep.subr.mxu0 0.0
          %493 = vmatpush2.msra.mxu0 0.0
          %494 = vmatprep.subr.mxu0 0.0
          %495 = vmatpush2.msra.mxu0 0.0
          %496 = vmatprep.subr.mxu0 0.0
          %497 = vmatpush2.msra.mxu0 0.0
          %498 = vmatprep.subr.mxu0 0.0
          %499 = vmatpush2.msra.mxu0 0.0
          %500 = vmatprep.subr.mxu0 0.0
          %501 = vmatpush2.msra.mxu0 0.0
          %502 = vmatprep.subr.mxu0 0.0
          %503 = vmatpush2.msra.mxu0 0.0
          %504 = vmatprep.subr.mxu0 0.0
          %505 = vmatpush2.msra.mxu0 0.0
          %506 = vmatprep.subr.mxu0 0.0
          %507 = vmatpush2.msra.mxu0 0.0
          %508 = vmatprep.subr.mxu0 0.0
          %509 = vmatpush2.msra.mxu0 0.0
          %510 = vmatprep.subr.mxu0 0.0
          %511 = vmatpush2.msra.mxu0 0.0
          %512 = vmatprep.subr.mxu0 0.0
          %513 = vmatpush2.msra.mxu0 0.0
          %514 = vmatprep.subr.mxu0 0.0
          %515 = vmatpush2.msra.mxu0 0.0
          %516 = vmatprep.mubr.f32.mxu0 0.0
          %517 = vmatmul.mubr.f32.gmra.mxu0 %v423
          %v518 = vpop.f32.mrf.mxu0
          %v519 = vadd.f32 %v451, %v518
          %v520 = vpop.f32.mrf.mxu0
          %521 = vdwg.mxu0
          %v522 = vmul.f32 %v519, 0.00390625
          %523 = vst [vmem:[#allocation10] sm:$0x1] %v522
        $region56: #{tpu_custom_call.1} parent=35 // pred_fallthru
          _
        // Predicated region
        $region57: #{tpu_custom_call.1} parent=35 // pred_check
          %p524 = pneg %p143
        $region58: #{tpu_custom_call.1} parent=35 // pred_check_branch
          %526 = sbr.rel (%p524) target = $region60
        $region59: #{tpu_custom_call.1} parent=35 // pred_region
          %s528 = ssub.s32 16, 16
          %529 = vsyncadd [#allocation6], %s528
          %s531 = sshll.u32 [#allocation10], 4
          %s532 = int_to_ptr.vmem [resolvable:$true] %s531
          %534 = dma.vmem_to_hbm [thread:$0]  %s532, 16, %s4, [#allocation6]
        $region60: #{tpu_custom_call.1} parent=35 // pred_fallthru
          _
        // Predicated region
        $region61: #{tpu_custom_call.1} parent=35 // pred_check
          %p535 = pneg %p143
        $region62: #{tpu_custom_call.1} parent=35 // pred_check_branch
          %537 = sbr.rel (%p535) target = $region64
        $region63: #{tpu_custom_call.1} parent=35 // pred_region
          %538 = dma.done [#allocation6], 16
        $region64: #{tpu_custom_call.1} parent=35 // pred_fallthru
          _
      $region36: #{tpu_custom_call.1} parent=5 // pred_fallthru
        _
      %p539 = scmp.le.s32.totalorder 2, %s17
      // Predicated region
      $region65: #{tpu_custom_call.1} parent=5 // pred_check
        %p540 = pneg %p539
      $region66: #{tpu_custom_call.1} parent=5 // pred_check_branch
        %542 = sbr.rel (%p540) target = $region68
      $region67: #{tpu_custom_call.1} parent=5 // pred_region
        %s543 = ssub.s32 %s17, 2
      $region68: #{tpu_custom_call.1} parent=5 // pred_fallthru
        _
    $region6: #{tpu_custom_call.1} parent=1 // loop_footer
      %s21 = sadd.s32 1, %s17
    $region7: #{tpu_custom_call.1} parent=1 // loop_footer_branch
      %16 = sbr.rel target = $region3
    $region8: #{tpu_custom_call.1} parent=1 // loop_exit
      _
    %544 = vsyncpa [#allocation5], 1
    %s545 = scalar_lea.sflag [#allocation5], 1
    %546 = vsyncpa %s545, 1
    %547 = vsyncpa [#allocation8], 1
    %s548 = scalar_lea.sflag [#allocation8], 1
    %549 = vsyncpa %s548, 1
    %550 = vsyncpa [#allocation6], 1
    %s551 = scalar_lea.sflag [#allocation6], 1
    %552 = vsyncpa %s551, 1

</llo_original>
